<compile_context>
chip_gen: v5e
topology: v5e:2x2
jax: 0.10.0
libtpu: 0.0.40
codegen_flags: <defaults>
</compile_context>

<pallas_src>
import numpy as np
import jax
import jax.numpy as jnp
from jax.experimental import pallas as pl
from jax.experimental.pallas import tpu as pltpu

_LANE = 128


def _dup_matrix(rows_per_block, W):
    """0/1 matrix mapping a flattened (rows, W) tile (length T=rows*W) to its
    2x nearest-upsampled tile, flattened in NCHW(2*rows, 2*W) row-major order."""
    T = rows_per_block * W
    D = np.zeros((T, 4 * T), np.float32)
    i = np.repeat(np.arange(rows_per_block), W)   # source row of each element
    j = np.tile(np.arange(W), rows_per_block)     # source col of each element
    src = np.arange(T)
    for a in (0, 1):
        for b in (0, 1):
            D[src, i * 4 * W + a * 2 * W + 2 * j + b] = 1.0
    return D


def _vmem_config():
    """Generation-aware (per-step block byte budget, vmem_limit_bytes)."""
    try:
        cap = pltpu.get_tpu_info().vmem_capacity_bytes
    except Exception:
        cap = 64 * 1024 * 1024                       # assume smallest (v7x-like)
    if cap <= 64 * 1024 * 1024:                      # v7x: 64 MiB physical VMEM
        return 16 * 1024 * 1024, 48 * 1024 * 1024
    return 24 * 1024 * 1024, 64 * 1024 * 1024        # v5e / v6e: 128 MiB physical


def _pick_row_tile(N, H, W, t_cap=256):
    """Pick rows-per-block th (th | H) so that T = th*W is lane-aligned
    (T % 128 == 0, or th == H i.e. full image -> full last dim, always legal)
    and T <= t_cap.  t_cap ~ 256 keeps the 4T-wide output store in the measured
    512-1024-lane sweet spot while bounding the quadratic upsample-matmul cost
    (most important on v5e's slower MXU) and D's VMEM footprint (v7x)."""
    legal = [th for th in range(1, H + 1)
             if H % th == 0 and ((th * W) % _LANE == 0 or th == H)]
    under = [th for th in legal if th * W <= t_cap]
    th = max(under) if under else min(legal)
    # v7x has 2 TensorCores: make sure a 'parallel' grid axis has >= 2 programs.
    if N * (H // th) < 2:
        smaller = [t for t in legal if t < th]
        if smaller:
            th = max(smaller)
    return th


def _block_bytes(C, Cout, T):
    """Approximate per-step VMEM working set (double-buffered x/out, bf16 D)."""
    return (2 * (C * T * 4 + Cout * 4 * T * 4 + T * 4 * T * 2)
            + Cout * C * 2 + Cout * 4)


def transition_kernel(x_ref, w_ref, b_ref, d_ref, o_ref):
    # x_ref : (1, C, T)  f32   input tile, T = rows_per_block * W (T on lanes)
    # w_ref : (Cout, C)  bf16  1x1 conv weight with BN scale folded in
    # b_ref : (Cout, 1)  f32   folded BN bias
    # d_ref : (T, 4T)    bf16  constant 0/1 nearest-upsample matrix (exact)
    # o_ref : (1, Cout, 4T)    upsampled output tile (lane-dense 4T store)
    x = x_ref[0].astype(jnp.bfloat16)                       # VPU cast, hidden under DMA
    y = jnp.dot(w_ref[...], x, preferred_element_type=jnp.float32)     # (Cout, T), bf16 MXU
    y = jnp.maximum(y + b_ref[...], 0.0)                                # BN bias + ReLU
    # Exact 0/1 selection matmul (one nonzero per column) -> f32 result equals a gather.
    up = jnp.dot(y, d_ref[...].astype(jnp.float32),
                 preferred_element_type=jnp.float32)                    # (Cout, 4T)
    o_ref[0] = up.astype(o_ref.dtype)


@jax.jit
def transition_forward(x_nchw, w, gamma, beta, mean, var, eps=1e-5):
    """x: (N, C, H, W); w: (C//2, C, 1, 1) conv weight (no bias); BN params: (C//2,).
    Returns (N, C//2, 2H, 2W) NCHW, matching Transition.forward in eval mode."""
    N, C, H, W = x_nchw.shape
    Cout = w.shape[0]

    budget, vmem_limit = _vmem_config()
    th = _pick_row_tile(N, H, W)
    T = th * W
    if _block_bytes(C, Cout, T) > budget:
        # TODO(synk): shapes whose H*W has no lane-aligned row tile under the
        # budget (e.g. odd feature maps) would need spatial padding; refuse
        # loudly instead of silently compiling an oversized D.
        raise ValueError(
            f"Transition kernel tile (T={T}) working set "
            f"{_block_bytes(C, Cout, T)} B exceeds VMEM budget {budget} B "
            f"for shape N={N}, C={C}, H={H}, W={W}.")

    # ---- fold BatchNorm (inference) into the conv weight / per-channel bias ----
    scale = gamma / jnp.sqrt(var + eps)
    wf = (w.reshape(Cout, C) * scale[:, None]).astype(jnp.bfloat16)      # (Cout, C)
    bf = (beta - mean * scale).reshape(Cout, 1).astype(jnp.float32)      # (Cout, 1)
    D = jnp.asarray(_dup_matrix(th, W), dtype=jnp.bfloat16)              # (T, 4T), exact 0/1

    x_flat = x_nchw.reshape(N, C, H * W)           # free reshape, stays NCHW-ordered
    grid = (N, H // th)

    flops = 2 * N * Cout * C * H * W + 8 * N * Cout * H * W * T
    bytes_accessed = (N * C * H * W * 4            # x read
                      + N * Cout * 4 * H * W * 4   # upsampled output write
                      + Cout * C * 2 + Cout * 4 + T * 4 * T * 2)
    cost = pl.CostEstimate(flops=flops, transcendentals=0,
                           bytes_accessed=bytes_accessed)

    out_flat = pl.pallas_call(
        transition_kernel,
        out_shape=jax.ShapeDtypeStruct((N, Cout, 4 * H * W), x_nchw.dtype),
        grid=grid,
        in_specs=[
            pl.BlockSpec((1, C, T), lambda n, r: (n, 0, r)),
            pl.BlockSpec((Cout, C), lambda n, r: (0, 0)),
            pl.BlockSpec((Cout, 1), lambda n, r: (0, 0)),
            pl.BlockSpec((T, 4 * T), lambda n, r: (0, 0)),
        ],
        out_specs=pl.BlockSpec((1, Cout, 4 * T), lambda n, r: (n, 0, r)),
        compiler_params=pltpu.CompilerParams(
            dimension_semantics=("parallel", "parallel"),
            vmem_limit_bytes=vmem_limit,
        ),
        cost_estimate=cost,
    )(x_flat, wf, bf, D)

    # The 4*H*W axis is already in (row, row_dup, col, col_dup) = NCHW(2H, 2W) order.
    return out_flat.reshape(N, Cout, 2 * H, 2 * W)


def reference_forward(x, w, gamma, beta, mean, var, eps=1e-5):
    """Pure-JAX reference of the PyTorch module (eval-mode BN), with the conv
    inputs rounded to bf16 exactly like the kernel's MXU path (f32 accumulate)."""
    Cout = w.shape[0]
    scale = gamma / jnp.sqrt(var + eps)
    wf = (w.reshape(Cout, -1) * scale[:, None]).astype(jnp.bfloat16).astype(jnp.float32)
    bias = beta - mean * scale
    xb = x.astype(jnp.bfloat16).astype(jnp.float32)
    y = jnp.einsum("oc,nchw->nohw", wf, xb)
    y = jnp.maximum(y + bias[None, :, None, None], 0.0)
    return jnp.repeat(jnp.repeat(y, 2, axis=2), 2, axis=3)   # nearest 2x upsample


if __name__ == "__main__":
    key = jax.random.PRNGKey(0)
    N, C, H, W = 2, 4, 16, 16
    Cout = C // 2

    kx, kw, kg, kb, km, kv = jax.random.split(key, 6)
    x = jax.random.normal(kx, (N, C, H, W), jnp.float32)
    w = jax.random.normal(kw, (Cout, C, 1, 1), jnp.float32) * 0.1
    gamma = 1.0 + 0.1 * jax.random.normal(kg, (Cout,), jnp.float32)
    beta = 0.1 * jax.random.normal(kb, (Cout,), jnp.float32)
    mean = 0.1 * jax.random.normal(km, (Cout,), jnp.float32)
    var = jnp.abs(jax.random.normal(kv, (Cout,), jnp.float32)) + 0.5

    out = jax.block_until_ready(transition_forward(x, w, gamma, beta, mean, var))
    ref = reference_forward(x, w, gamma, beta, mean, var)

    assert out.shape == (N, Cout, 2 * H, 2 * W), out.shape
    max_err = float(jnp.max(jnp.abs(out - ref)))
    assert max_err < 1e-3, max_err
    print("KERNEL_OK")
</pallas_src>

<mosaic_0001>
module attributes {stable_mosaic.version = 11 : i64} {
  func.func @transition_kernel(%arg0: i32, %arg1: i32, %arg2: memref<1x4x256xf32, #tpu.memory_space<vmem>>, %arg3: memref<2x4xbf16, #tpu.memory_space<vmem>>, %arg4: memref<2x1xf32, #tpu.memory_space<vmem>>, %arg5: memref<256x1024xbf16, #tpu.memory_space<vmem>>, %arg6: memref<1x2x1024xf32, #tpu.memory_space<vmem>>) attributes {dimension_semantics = [#tpu.dimension_semantics<parallel>, #tpu.dimension_semantics<parallel>], iteration_bounds = array<i64: 2, 1>, scalar_prefetch = 0 : i64, scratch_operands = 0 : i64, tpu.core_type = #tpu.core_type<tc>, window_params = [{transform_indices = @transform_0, window_bounds = array<i64: 1, 4, 256>}, {pipeline_mode = #tpu.pipeline_mode<synchronous>, transform_indices = @transform_1, window_bounds = array<i64: 2, 4>}, {pipeline_mode = #tpu.pipeline_mode<synchronous>, transform_indices = @transform_2, window_bounds = array<i64: 2, 1>}, {pipeline_mode = #tpu.pipeline_mode<synchronous>, transform_indices = @transform_3, window_bounds = array<i64: 256, 1024>}, {transform_indices = @transform_4, window_bounds = array<i64: 1, 2, 1024>}]} {
    %c0 = arith.constant 0 : index
    %c0_0 = arith.constant 0 : index
    %c0_1 = arith.constant 0 : index
    %0 = vector.load %arg2[%c0, %c0_0, %c0_1] : memref<1x4x256xf32, #tpu.memory_space<vmem>>, vector<1x4x256xf32>
    %1 = vector.shape_cast %0 : vector<1x4x256xf32> to vector<4x256xf32>
    %2 = arith.truncf %1 : vector<4x256xf32> to vector<4x256xbf16>
    %c0_2 = arith.constant 0 : index
    %c0_3 = arith.constant 0 : index
    %3 = vector.load %arg3[%c0_2, %c0_3] : memref<2x4xbf16, #tpu.memory_space<vmem>>, vector<2x4xbf16>
    %cst = arith.constant dense<0.000000e+00> : vector<2x256xf32>
    %4 = tpu.matmul %3, %2, %cst {dimension_numbers = #tpu.dot_dimension_numbers<[1], [0], [0], [1], [0, 0, 1, 1], [], []>} : vector<2x4xbf16>, vector<4x256xbf16>, vector<2x256xf32> -> vector<2x256xf32>
    %c0_4 = arith.constant 0 : index
    %c0_5 = arith.constant 0 : index
    %5 = vector.load %arg4[%c0_4, %c0_5] : memref<2x1xf32, #tpu.memory_space<vmem>>, vector<2x1xf32>
    %6 = vector.broadcast %5 : vector<2x1xf32> to vector<2x256xf32>
    %7 = arith.addf %4, %6 : vector<2x256xf32>
    %cst_6 = arith.constant 0.000000e+00 : f32
    %8 = vector.broadcast %cst_6 : f32 to vector<2x256xf32>
    %9 = arith.maximumf %7, %8 : vector<2x256xf32>
    %c0_7 = arith.constant 0 : index
    %c0_8 = arith.constant 0 : index
    %10 = vector.load %arg5[%c0_7, %c0_8] : memref<256x1024xbf16, #tpu.memory_space<vmem>>, vector<256x1024xbf16>
    %11 = arith.extf %10 : vector<256x1024xbf16> to vector<256x1024xf32>
    %cst_9 = arith.constant dense<0.000000e+00> : vector<2x1024xf32>
    %12 = tpu.matmul %9, %11, %cst_9 {dimension_numbers = #tpu.dot_dimension_numbers<[1], [0], [0], [1], [0, 0, 1, 1], [], []>} : vector<2x256xf32>, vector<256x1024xf32>, vector<2x1024xf32> -> vector<2x1024xf32>
    %c0_10 = arith.constant 0 : index
    %c0_11 = arith.constant 0 : index
    %c0_12 = arith.constant 0 : index
    %13 = vector.load %arg6[%c0_10, %c0_11, %c0_12] : memref<1x2x1024xf32, #tpu.memory_space<vmem>>, vector<1x2x1024xf32>
    %14 = vector.shape_cast %13 : vector<1x2x1024xf32> to vector<2x1024xf32>
    %15 = vector.shape_cast %12 : vector<2x1024xf32> to vector<1x2x1024xf32>
    tpu.vector_store %arg6[%c0_10, %c0_11, %c0_12], %15 {strides = array<i32>} : memref<1x2x1024xf32, #tpu.memory_space<vmem>>, vector<1x2x1024xf32>,
    return
  }
  func.func @transform_0(%arg0: i32, %arg1: i32) -> (i32, i32, i32) {
    %c0_i32 = arith.constant 0 : i32
    %c0_i32_0 = arith.constant 0 : i32
    return %arg0, %c0_i32, %arg1 : i32, i32, i32
  }
  func.func @transform_1(%arg0: i32, %arg1: i32) -> (i32, i32) {
    %c0_i32 = arith.constant 0 : i32
    %c0_i32_0 = arith.constant 0 : i32
    %c0_i32_1 = arith.constant 0 : i32
    return %c0_i32, %c0_i32_0 : i32, i32
  }
  func.func @transform_2(%arg0: i32, %arg1: i32) -> (i32, i32) {
    %c0_i32 = arith.constant 0 : i32
    %c0_i32_0 = arith.constant 0 : i32
    %c0_i32_1 = arith.constant 0 : i32
    return %c0_i32, %c0_i32_0 : i32, i32
  }
  func.func @transform_3(%arg0: i32, %arg1: i32) -> (i32, i32) {
    %c0_i32 = arith.constant 0 : i32
    %c0_i32_0 = arith.constant 0 : i32
    %c0_i32_1 = arith.constant 0 : i32
    return %c0_i32, %c0_i32_0 : i32, i32
  }
  func.func @transform_4(%arg0: i32, %arg1: i32) -> (i32, i32, i32) {
    %c0_i32 = arith.constant 0 : i32
    %c0_i32_0 = arith.constant 0 : i32
    return %arg0, %c0_i32, %arg1 : i32, i32, i32
  }
}

</mosaic_0001>

<llo_original>
// kernel: transition_forward.1
$region0: #{transition_forward.1}
  #allocation0 [shape = 'u32[]', space=smem, size = 0x4, offset = 0x4, fixed_abs, tag = 'smem constant byte address 0x4 - core index']
  #allocation1 [shape = 'u32[72,128]{1,0:T(1,128)}', space=vmem, size = 0x9000, scoped, tag = 'internal scratch']
  %s0 = inlined_call_operand.vmem [shape: f32[2,4,256], index: 0, kind: input, shape index: {}]
  %s1 = inlined_call_operand.vmem [shape: bf16[2,4], index: 1, kind: input, shape index: {}]
  %s2 = inlined_call_operand.vmem [shape: f32[2,1], index: 2, kind: input, shape index: {}]
  %s3 = inlined_call_operand.hbm [shape: bf16[256,1024], index: 3, kind: input, shape index: {}]
  %s4 = inlined_call_operand.vmem [shape: f32[2,2,1024], index: 4, kind: output, shape index: {}]
  %s5 = sld [smem:[#allocation0]]
  $region53: #{transition_forward.1} parent=0
    _
  %s7 = ssub.s32 1, %s5
  %s8 = scalar_select 0, %s7, %s5
  $region1: #{transition_forward.1} parent=0
    #allocation2 [shape = 'u8[524288]{0}', space=vmem, size = 0x80000, scoped, tag = 'input window, operand 3, single buffered']
    #allocation3 [shape = 's32[2]{0}', space=sflag, size = 0x8, scoped, tag = 'scoped memory for transition_forward.1']
    %9 = vsyncpa [#allocation3], 0
    loop: start=0, step=1, limit=4
    $region2: #{transition_forward.1} parent=1 // loop_pre_header
      _
    $region3: #{transition_forward.1} parent=1 // loop_header
      %s11 = sphi 0, %s15
      %p12 = scmp.ge.s32.totalorder %s11, 4
      %s18 = sphi 0, %s30
      %s19 = sphi 0, %s26
      %s20 = sphi 0, %s18
      %s21 = sphi 0, %s19
      %s22 = sphi 0, %s20
      %s23 = sphi 0, %s21
      %s35 = sphi 0, %s37
      %s38 = sphi 0, %s35
      %s39 = sphi 0, %s38
      %s55 = sphi 0, %s39
      %s59 = sphi 0, %s59
      %s61 = sphi 0, %s59
      %s62 = sphi 0, %s61
      %s76 = sphi 0, %s62
      %s80 = sphi 0, %s80
      %s82 = sphi 0, %s80
      %s83 = sphi 0, %s82
      %s97 = sphi 0, %s83
      %s101 = sphi 0, %s101
      %s103 = sphi 0, %s101
      %s104 = sphi 0, %s103
      %s118 = sphi 0, %s104
      %s126 = sphi 0, %s128
      %s129 = sphi 0, %s126
      %s130 = sphi 0, %s129
      %s146 = sphi 0, %s130
    $region4: #{transition_forward.1} parent=1 // loop_header_branch
      %14 = sbr.rel (%p12) target = $region8
    $region5: #{transition_forward.1} parent=1 // loop_body
      %s16 = ssub.s32 %s11, 1
      %s17 = ssub.s32 %s11, 2
      %s24 = sadd.s32 1, %s19
      %p25 = scmp.ge.s32.totalorder %s24, 1
      %s26 = scalar_select %p25, 0, %s24
      %s27 = sadd.s32 1, %s18
      %s28 = scalar_select %p25, %s27, %s18
      %p29 = scmp.ge.s32.totalorder %s28, 2
      %s30 = scalar_select %p29, 0, %s28
      %s31 = ssub.s32 %s18, %s30
      %s32 = ssub.s32 %s19, %s26
      %s33 = sor.u32 %s31, %s32
      %p34 = scmp.eq.s32.totalorder %s33, 0
      %s36 = sadd.s32 %s35, 1
      %s37 = scalar_select %p34, %s35, %s36
      %p40 = pneg %p34
      %p41 = scmp.eq.s32.totalorder %s11, 1
      %p42 = por %p40, %p41
      %p43 = scmp.ne.s32.totalorder %s35, %s38
      %p44 = scmp.eq.s32.totalorder %s11, 0
      %p45 = por %p43, %p44
      %p46 = scmp.ne.s32.totalorder %s35, %s38
      %p47 = scmp.eq.s32.totalorder %s16, 1
      %p48 = por %p46, %p47
      %p49 = scmp.ne.s32.totalorder %s38, %s39
      %p50 = scmp.eq.s32.totalorder %s16, 0
      %p51 = por %p49, %p50
      %p52 = scmp.ne.s32.totalorder %s38, %s39
      %p53 = scmp.eq.s32.totalorder %s17, 1
      %p54 = por %p52, %p53
      %p56 = scmp.ne.s32.totalorder %s39, %s55
      %p57 = scmp.eq.s32.totalorder %s17, 0
      %p58 = por %p56, %p57
      %s60 = sadd.s32 %s59, 1
      %p63 = scmp.eq.s32.totalorder %s11, 1
      %p64 = scmp.ne.s32.totalorder %s59, %s61
      %p65 = scmp.eq.s32.totalorder %s11, 0
      %p66 = por %p64, %p65
      %p67 = scmp.ne.s32.totalorder %s59, %s61
      %p68 = scmp.eq.s32.totalorder %s16, 1
      %p69 = por %p67, %p68
      %p70 = scmp.ne.s32.totalorder %s61, %s62
      %p71 = scmp.eq.s32.totalorder %s16, 0
      %p72 = por %p70, %p71
      %p73 = scmp.ne.s32.totalorder %s61, %s62
      %p74 = scmp.eq.s32.totalorder %s17, 1
      %p75 = por %p73, %p74
      %p77 = scmp.ne.s32.totalorder %s62, %s76
      %p78 = scmp.eq.s32.totalorder %s17, 0
      %p79 = por %p77, %p78
      %s81 = sadd.s32 %s80, 1
      %p84 = scmp.eq.s32.totalorder %s11, 1
      %p85 = scmp.ne.s32.totalorder %s80, %s82
      %p86 = scmp.eq.s32.totalorder %s11, 0
      %p87 = por %p85, %p86
      %p88 = scmp.ne.s32.totalorder %s80, %s82
      %p89 = scmp.eq.s32.totalorder %s16, 1
      %p90 = por %p88, %p89
      %p91 = scmp.ne.s32.totalorder %s82, %s83
      %p92 = scmp.eq.s32.totalorder %s16, 0
      %p93 = por %p91, %p92
      %p94 = scmp.ne.s32.totalorder %s82, %s83
      %p95 = scmp.eq.s32.totalorder %s17, 1
      %p96 = por %p94, %p95
      %p98 = scmp.ne.s32.totalorder %s83, %s97
      %p99 = scmp.eq.s32.totalorder %s17, 0
      %p100 = por %p98, %p99
      %s102 = sadd.s32 %s101, 1
      %p105 = scmp.eq.s32.totalorder %s11, 1
      %p106 = scmp.ne.s32.totalorder %s101, %s103
      %p107 = scmp.eq.s32.totalorder %s11, 0
      %p108 = por %p106, %p107
      %p109 = scmp.ne.s32.totalorder %s101, %s103
      %p110 = scmp.eq.s32.totalorder %s16, 1
      %p111 = por %p109, %p110
      %p112 = scmp.ne.s32.totalorder %s103, %s104
      %p113 = scmp.eq.s32.totalorder %s16, 0
      %p114 = por %p112, %p113
      %p115 = scmp.ne.s32.totalorder %s103, %s104
      %p116 = scmp.eq.s32.totalorder %s17, 1
      %p117 = por %p115, %p116
      %p119 = scmp.ne.s32.totalorder %s104, %s118
      %p120 = scmp.eq.s32.totalorder %s17, 0
      %p121 = por %p119, %p120
      %s122 = ssub.s32 %s18, %s30
      %s123 = ssub.s32 %s19, %s26
      %s124 = sor.u32 %s122, %s123
      %p125 = scmp.eq.s32.totalorder %s124, 0
      %s127 = sadd.s32 %s126, 1
      %s128 = scalar_select %p125, %s126, %s127
      %p131 = pneg %p125
      %p132 = scmp.eq.s32.totalorder %s11, 1
      %p133 = por %p131, %p132
      %p134 = scmp.ne.s32.totalorder %s126, %s129
      %p135 = scmp.eq.s32.totalorder %s11, 0
      %p136 = por %p134, %p135
      %p137 = scmp.ne.s32.totalorder %s126, %s129
      %p138 = scmp.eq.s32.totalorder %s16, 1
      %p139 = por %p137, %p138
      %p140 = scmp.ne.s32.totalorder %s129, %s130
      %p141 = scmp.eq.s32.totalorder %s16, 0
      %p142 = por %p140, %p141
      %p143 = scmp.ne.s32.totalorder %s129, %s130
      %p144 = scmp.eq.s32.totalorder %s17, 1
      %p145 = por %p143, %p144
      %p147 = scmp.ne.s32.totalorder %s130, %s146
      %p148 = scmp.eq.s32.totalorder %s17, 0
      %p149 = por %p147, %p148
      %p150 = scmp.le.s32.totalorder 1, %s11
      %p151 = scmp.lt.s32.totalorder %s11, 3
      %p152 = pnand %p150, %p151
      %p153 = pneg %p152
      // Predicated region
      $region9: #{transition_forward.1} parent=5 // pred_check
        _
      $region10: #{transition_forward.1} parent=5 // pred_check_branch
        %155 = sbr.rel (%p152) target = $region12
      $region11: #{transition_forward.1} parent=5 // pred_region
        %s156 = ssub.s32 %s11, 1
        // Predicated region
        $region13: #{transition_forward.1} parent=11 // pred_check
          %p157 = pneg %p72
        $region14: #{transition_forward.1} parent=11 // pred_check_branch
          %159 = sbr.rel (%p157) target = $region16
        $region15: #{transition_forward.1} parent=11 // pred_region
          _
        $region16: #{transition_forward.1} parent=11 // pred_fallthru
          _
        // Predicated region
        $region17: #{transition_forward.1} parent=11 // pred_check
          %p160 = pneg %p93
        $region18: #{transition_forward.1} parent=11 // pred_check_branch
          %162 = sbr.rel (%p160) target = $region20
        $region19: #{transition_forward.1} parent=11 // pred_region
          _
        $region20: #{transition_forward.1} parent=11 // pred_fallthru
          _
        // Predicated region
        $region21: #{transition_forward.1} parent=11 // pred_check
          %p163 = pneg %p114
        $region22: #{transition_forward.1} parent=11 // pred_check_branch
          %165 = sbr.rel (%p163) target = $region24
        $region23: #{transition_forward.1} parent=11 // pred_region
          %167 = vsyncadd [#allocation3], 0
          %s168 = sshll.u32 %s3, 4
          %s169 = int_to_ptr.hbm [resolvable:$true] %s168
          %s170 = sshll.u32 [#allocation2], 4
          %s171 = int_to_ptr.vmem [resolvable:$true] %s170
          %176 = dma.hbm_to_vmem [thread:$0]  %s169, 16384, %s171, [#allocation3], 512, 512, 32
        $region24: #{transition_forward.1} parent=11 // pred_fallthru
          _
      $region12: #{transition_forward.1} parent=5 // pred_fallthru
        _
      %p177 = scmp.lt.s32.totalorder %s11, 2
      // Predicated region
      $region25: #{transition_forward.1} parent=5 // pred_check
        %p178 = pneg %p177
      $region26: #{transition_forward.1} parent=5 // pred_check_branch
        %180 = sbr.rel (%p178) target = $region28
      $region27: #{transition_forward.1} parent=5 // pred_region
        // Predicated region
        $region29: #{transition_forward.1} parent=27 // pred_check
          %p181 = pneg %p45
        $region30: #{transition_forward.1} parent=27 // pred_check_branch
          %183 = sbr.rel (%p181) target = $region32
        $region31: #{transition_forward.1} parent=27 // pred_region
          %s184 = smul.u32 2, %s19
          %p185 = scmp.lt.s32.totalorder %s18, 1
          %s186 = scalar_select %p185, %s18, 1
          %p187 = scmp.lt.s32.totalorder %s184, 1
          %s188 = scalar_select %p187, %s184, 1
          %s189 = smul.addr %s186, 2
          %s190 = sadd.s32 %s188, %s189
          %s191 = smul.addr %s190, 4
          %s192 = scalar_lea.vmem %s0, %s191
          %s193 = smul.u32 2, %s19
        $region32: #{transition_forward.1} parent=27 // pred_fallthru
          _
      $region28: #{transition_forward.1} parent=5 // pred_fallthru
        _
      %p194 = scmp.le.s32.totalorder 1, %s11
      %p195 = scmp.lt.s32.totalorder %s11, 3
      %p196 = pnand %p194, %p195
      %p197 = pneg %p196
      // Predicated region
      $region33: #{transition_forward.1} parent=5 // pred_check
        _
      $region34: #{transition_forward.1} parent=5 // pred_check_branch
        %199 = sbr.rel (%p196) target = $region36
      $region35: #{transition_forward.1} parent=5 // pred_region
        %s200 = ssub.s32 %s11, 1
        // Predicated region
        $region37: #{transition_forward.1} parent=35 // pred_check
          %p201 = pneg %p114
        $region38: #{transition_forward.1} parent=35 // pred_check_branch
          %203 = sbr.rel (%p201) target = $region40
        $region39: #{transition_forward.1} parent=35 // pred_region
          %205 = dma.done [#allocation3], 16384
        $region40: #{transition_forward.1} parent=35 // pred_fallthru
          _
        %s206 = smul.u32 2, %s21
        %p207 = scmp.lt.s32.totalorder %s20, 1
        %s208 = scalar_select %p207, %s20, 1
        %p209 = scmp.lt.s32.totalorder %s206, 1
        %s210 = scalar_select %p209, %s206, 1
        %s211 = smul.addr %s208, 2
        %s212 = sadd.s32 %s210, %s211
        %s213 = smul.addr %s212, 4
        %s214 = scalar_lea.vmem %s0, %s213
        %p215 = pneg %p51
        %p216 = pneg %p48
        %p217 = pneg %p72
        %p218 = pneg %p69
        %p219 = pneg %p93
        %p220 = pneg %p90
        %p221 = pneg %p114
        %p222 = pneg %p111
        %p223 = pneg %p142
        %p224 = pneg %p139
        %s225 = smul.u32 8, %s21
        %p226 = scmp.lt.s32.totalorder %s20, 1
        %s227 = scalar_select %p226, %s20, 1
        %p228 = scmp.lt.s32.totalorder %s225, 7
        %s229 = scalar_select %p228, %s225, 7
        %s230 = smul.addr %s227, 8
        %s231 = sadd.s32 %s229, %s230
        %s232 = smul.addr %s231, 2
        %s233 = scalar_lea.vmem %s4, %s232
        %s234 = smul.u32 2, %s21
        %p235 = scmp.lt.s32.totalorder %s20, 1
        %s236 = scalar_select %p235, %s20, 1
        %p237 = scmp.lt.s32.totalorder %s234, 1
        %s238 = scalar_select %p237, %s234, 1
        %s239 = smul.addr %s236, 2
        %s240 = sadd.s32 %s238, %s239
        %s241 = smul.addr %s240, 4
        %s242 = scalar_lea.vmem %s0, %s241
        %s243 = smul.u32 2, %s21
        %s244 = smul.u32 8, %s21
        %p245 = scmp.lt.s32.totalorder %s20, 1
        %s246 = scalar_select %p245, %s20, 1
        %p247 = scmp.lt.s32.totalorder %s244, 7
        %s248 = scalar_select %p247, %s244, 7
        %s249 = smul.addr %s246, 8
        %s250 = sadd.s32 %s248, %s249
        %s251 = smul.addr %s250, 2
        %s252 = scalar_lea.vmem %s4, %s251
        %s253 = smul.u32 8, %s21
        %v255 = vld [vmem:[%s242] sm:$0xff]
        %257 = vst [vmem:[#allocation1] ss:$2 sm:$0xff] %v255
        %v258 = vld.sshfl [vmem:[#allocation1] sm:$0xff pattern:$0x75316420]
        %v259 = vld.sshfl [vmem:[#allocation1 + $0x8] sm:$0xff pattern:$0x75316420]
        %v262 = vpack.c.bf16 %v258, %v258
        %v263 = vpack.c.bf16 %v259, %v259
        %v264 = vld [vmem:[%s1] sm:$0x1]
        %v265 = vld [vmem:[%s2] sm:$0x3]
        %267 = vset.pattern.permute.xlu0 0
        %268 = vperm.xlu0 %267, %v265
        %v269 = vpop.permute.xlu0 %268
        %vm271 = vcmask 31744
        %v273 = vsel %vm271, %v264, 0
        %vm275 = vcmask 1041408
        %v277 = vsel %vm275, %v262, 0
        %v280 = vsel %vm275, %v263, 0
        %282 = vmatpush.bf16.msra.mxu0 0
        %283 = vmatpush.bf16.msra.mxu0 0
        %284 = vmatpush.bf16.msra.mxu0 0
        %285 = vmatpush.bf16.msra.mxu0 0
        %286 = vmatpush.bf16.msra.mxu0 0
        %287 = vmatpush.bf16.msra.mxu0 0
        %288 = vmatpush.bf16.msra.mxu0 0
        %289 = vmatpush.bf16.msra.mxu0 %v277
        %290 = vmatmul.bf16.gmra.mxu0 %v273
        %v291 = vpop.f32.mrf.mxu0
        %v292 = vadd.f32 %v269, %v291
        %v293 = vpop.f32.mrf.mxu0
        %294 = vdwg.mxu0
        %295 = vmatpush.bf16.msra.mxu0 0
        %296 = vmatpush.bf16.msra.mxu0 0
        %297 = vmatpush.bf16.msra.mxu0 0
        %298 = vmatpush.bf16.msra.mxu0 0
        %299 = vmatpush.bf16.msra.mxu0 0
        %300 = vmatpush.bf16.msra.mxu0 0
        %301 = vmatpush.bf16.msra.mxu0 0
        %302 = vmatpush.bf16.msra.mxu0 %v280
        %303 = vmatmul.bf16.gmra.mxu0 %v273
        %v304 = vpop.f32.mrf.mxu0
        %v305 = vadd.f32 %v269, %v304
        %v306 = vpop.f32.mrf.mxu0
        %307 = vdwg.mxu0
        %v308 = vmax.f32 %v292, 0.0
        %v309 = vmax.f32 %v305, 0.0
        %v310 = vld [vmem:[#allocation2] sm:$0xff]
        %v311 = vld [vmem:[#allocation2 + $0x8] sm:$0xff]
        %v312 = vld [vmem:[#allocation2 + $0x10] sm:$0xff]
        %v313 = vld [vmem:[#allocation2 + $0x18] sm:$0xff]
        %v314 = vld [vmem:[#allocation2 + $0x20] sm:$0xff]
        %v315 = vld [vmem:[#allocation2 + $0x28] sm:$0xff]
        %v316 = vld [vmem:[#allocation2 + $0x30] sm:$0xff]
        %v317 = vld [vmem:[#allocation2 + $0x38] sm:$0xff]
        %v318 = vld [vmem:[#allocation2 + $0x40] sm:$0xff]
        %v319 = vld [vmem:[#allocation2 + $0x48] sm:$0xff]
        %v320 = vld [vmem:[#allocation2 + $0x50] sm:$0xff]
        %v321 = vld [vmem:[#allocation2 + $0x58] sm:$0xff]
        %v322 = vld [vmem:[#allocation2 + $0x60] sm:$0xff]
        %v323 = vld [vmem:[#allocation2 + $0x68] sm:$0xff]
        %v324 = vld [vmem:[#allocation2 + $0x70] sm:$0xff]
        %v325 = vld [vmem:[#allocation2 + $0x78] sm:$0xff]
        %v326 = vld [vmem:[#allocation2 + $0x80] sm:$0xff]
        %v327 = vld [vmem:[#allocation2 + $0x88] sm:$0xff]
        %v328 = vld [vmem:[#allocation2 + $0x90] sm:$0xff]
        %v329 = vld [vmem:[#allocation2 + $0x98] sm:$0xff]
        %v330 = vld [vmem:[#allocation2 + $0xa0] sm:$0xff]
        %v331 = vld [vmem:[#allocation2 + $0xa8] sm:$0xff]
        %v332 = vld [vmem:[#allocation2 + $0xb0] sm:$0xff]
        %v333 = vld [vmem:[#allocation2 + $0xb8] sm:$0xff]
        %v334 = vld [vmem:[#allocation2 + $0xc0] sm:$0xff]
        %v335 = vld [vmem:[#allocation2 + $0xc8] sm:$0xff]
        %v336 = vld [vmem:[#allocation2 + $0xd0] sm:$0xff]
        %v337 = vld [vmem:[#allocation2 + $0xd8] sm:$0xff]
        %v338 = vld [vmem:[#allocation2 + $0xe0] sm:$0xff]
        %v339 = vld [vmem:[#allocation2 + $0xe8] sm:$0xff]
        %v340 = vld [vmem:[#allocation2 + $0xf0] sm:$0xff]
        %v341 = vld [vmem:[#allocation2 + $0xf8] sm:$0xff]
        %v342 = vld [vmem:[#allocation2 + $0x100] sm:$0xff]
        %v343 = vld [vmem:[#allocation2 + $0x108] sm:$0xff]
        %v344 = vld [vmem:[#allocation2 + $0x110] sm:$0xff]
        %v345 = vld [vmem:[#allocation2 + $0x118] sm:$0xff]
        %v346 = vld [vmem:[#allocation2 + $0x120] sm:$0xff]
        %v347 = vld [vmem:[#allocation2 + $0x128] sm:$0xff]
        %v348 = vld [vmem:[#allocation2 + $0x130] sm:$0xff]
        %v349 = vld [vmem:[#allocation2 + $0x138] sm:$0xff]
        %v350 = vld [vmem:[#allocation2 + $0x140] sm:$0xff]
        %v351 = vld [vmem:[#allocation2 + $0x148] sm:$0xff]
        %v352 = vld [vmem:[#allocation2 + $0x150] sm:$0xff]
        %v353 = vld [vmem:[#allocation2 + $0x158] sm:$0xff]
        %v354 = vld [vmem:[#allocation2 + $0x160] sm:$0xff]
        %v355 = vld [vmem:[#allocation2 + $0x168] sm:$0xff]
        %v356 = vld [vmem:[#allocation2 + $0x170] sm:$0xff]
        %v357 = vld [vmem:[#allocation2 + $0x178] sm:$0xff]
        %v358 = vld [vmem:[#allocation2 + $0x180] sm:$0xff]
        %v359 = vld [vmem:[#allocation2 + $0x188] sm:$0xff]
        %v360 = vld [vmem:[#allocation2 + $0x190] sm:$0xff]
        %v361 = vld [vmem:[#allocation2 + $0x198] sm:$0xff]
        %v362 = vld [vmem:[#allocation2 + $0x1a0] sm:$0xff]
        %v363 = vld [vmem:[#allocation2 + $0x1a8] sm:$0xff]
        %v364 = vld [vmem:[#allocation2 + $0x1b0] sm:$0xff]
        %v365 = vld [vmem:[#allocation2 + $0x1b8] sm:$0xff]
        %v366 = vld [vmem:[#allocation2 + $0x1c0] sm:$0xff]
        %v367 = vld [vmem:[#allocation2 + $0x1c8] sm:$0xff]
        %v368 = vld [vmem:[#allocation2 + $0x1d0] sm:$0xff]
        %v369 = vld [vmem:[#allocation2 + $0x1d8] sm:$0xff]
        %v370 = vld [vmem:[#allocation2 + $0x1e0] sm:$0xff]
        %v371 = vld [vmem:[#allocation2 + $0x1e8] sm:$0xff]
        %v372 = vld [vmem:[#allocation2 + $0x1f0] sm:$0xff]
        %v373 = vld [vmem:[#allocation2 + $0x1f8] sm:$0xff]
        %v374 = vld [vmem:[#allocation2 + $0x200] sm:$0xff]
        %v375 = vld [vmem:[#allocation2 + $0x208] sm:$0xff]
        %v376 = vld [vmem:[#allocation2 + $0x210] sm:$0xff]
        %v377 = vld [vmem:[#allocation2 + $0x218] sm:$0xff]
        %v378 = vld [vmem:[#allocation2 + $0x220] sm:$0xff]
        %v379 = vld [vmem:[#allocation2 + $0x228] sm:$0xff]
        %v380 = vld [vmem:[#allocation2 + $0x230] sm:$0xff]
        %v381 = vld [vmem:[#allocation2 + $0x238] sm:$0xff]
        %v382 = vld [vmem:[#allocation2 + $0x240] sm:$0xff]
        %v383 = vld [vmem:[#allocation2 + $0x248] sm:$0xff]
        %v384 = vld [vmem:[#allocation2 + $0x250] sm:$0xff]
        %v385 = vld [vmem:[#allocation2 + $0x258] sm:$0xff]
        %v386 = vld [vmem:[#allocation2 + $0x260] sm:$0xff]
        %v387 = vld [vmem:[#allocation2 + $0x268] sm:$0xff]
        %v388 = vld [vmem:[#allocation2 + $0x270] sm:$0xff]
        %v389 = vld [vmem:[#allocation2 + $0x278] sm:$0xff]
        %v390 = vld [vmem:[#allocation2 + $0x280] sm:$0xff]
        %v391 = vld [vmem:[#allocation2 + $0x288] sm:$0xff]
        %v392 = vld [vmem:[#allocation2 + $0x290] sm:$0xff]
        %v393 = vld [vmem:[#allocation2 + $0x298] sm:$0xff]
        %v394 = vld [vmem:[#allocation2 + $0x2a0] sm:$0xff]
        %v395 = vld [vmem:[#allocation2 + $0x2a8] sm:$0xff]
        %v396 = vld [vmem:[#allocation2 + $0x2b0] sm:$0xff]
        %v397 = vld [vmem:[#allocation2 + $0x2b8] sm:$0xff]
        %v398 = vld [vmem:[#allocation2 + $0x2c0] sm:$0xff]
        %v399 = vld [vmem:[#allocation2 + $0x2c8] sm:$0xff]
        %v400 = vld [vmem:[#allocation2 + $0x2d0] sm:$0xff]
        %v401 = vld [vmem:[#allocation2 + $0x2d8] sm:$0xff]
        %v402 = vld [vmem:[#allocation2 + $0x2e0] sm:$0xff]
        %v403 = vld [vmem:[#allocation2 + $0x2e8] sm:$0xff]
        %v404 = vld [vmem:[#allocation2 + $0x2f0] sm:$0xff]
        %v405 = vld [vmem:[#allocation2 + $0x2f8] sm:$0xff]
        %v406 = vld [vmem:[#allocation2 + $0x300] sm:$0xff]
        %v407 = vld [vmem:[#allocation2 + $0x308] sm:$0xff]
        %v408 = vld [vmem:[#allocation2 + $0x310] sm:$0xff]
        %v409 = vld [vmem:[#allocation2 + $0x318] sm:$0xff]
        %v410 = vld [vmem:[#allocation2 + $0x320] sm:$0xff]
        %v411 = vld [vmem:[#allocation2 + $0x328] sm:$0xff]
        %v412 = vld [vmem:[#allocation2 + $0x330] sm:$0xff]
        %v413 = vld [vmem:[#allocation2 + $0x338] sm:$0xff]
        %v414 = vld [vmem:[#allocation2 + $0x340] sm:$0xff]
        %v415 = vld [vmem:[#allocation2 + $0x348] sm:$0xff]
        %v416 = vld [vmem:[#allocation2 + $0x350] sm:$0xff]
        %v417 = vld [vmem:[#allocation2 + $0x358] sm:$0xff]
        %v418 = vld [vmem:[#allocation2 + $0x360] sm:$0xff]
        %v419 = vld [vmem:[#allocation2 + $0x368] sm:$0xff]
        %v420 = vld [vmem:[#allocation2 + $0x370] sm:$0xff]
        %v421 = vld [vmem:[#allocation2 + $0x378] sm:$0xff]
        %v422 = vld [vmem:[#allocation2 + $0x380] sm:$0xff]
        %v423 = vld [vmem:[#allocation2 + $0x388] sm:$0xff]
        %v424 = vld [vmem:[#allocation2 + $0x390] sm:$0xff]
        %v425 = vld [vmem:[#allocation2 + $0x398] sm:$0xff]
        %v426 = vld [vmem:[#allocation2 + $0x3a0] sm:$0xff]
        %v427 = vld [vmem:[#allocation2 + $0x3a8] sm:$0xff]
        %v428 = vld [vmem:[#allocation2 + $0x3b0] sm:$0xff]
        %v429 = vld [vmem:[#allocation2 + $0x3b8] sm:$0xff]
        %v430 = vld [vmem:[#allocation2 + $0x3c0] sm:$0xff]
        %v431 = vld [vmem:[#allocation2 + $0x3c8] sm:$0xff]
        %v432 = vld [vmem:[#allocation2 + $0x3d0] sm:$0xff]
        %v433 = vld [vmem:[#allocation2 + $0x3d8] sm:$0xff]
        %v434 = vld [vmem:[#allocation2 + $0x3e0] sm:$0xff]
        %v435 = vld [vmem:[#allocation2 + $0x3e8] sm:$0xff]
        %v436 = vld [vmem:[#allocation2 + $0x3f0] sm:$0xff]
        %v437 = vld [vmem:[#allocation2 + $0x3f8] sm:$0xff]
        %v438 = vunpack.c.l.bf16 %v310
        %v439 = vunpack.c.h.bf16 %v310
        %v440 = vunpack.c.l.bf16 %v311
        %v441 = vunpack.c.h.bf16 %v311
        %v442 = vunpack.c.l.bf16 %v312
        %v443 = vunpack.c.h.bf16 %v312
        %v444 = vunpack.c.l.bf16 %v313
        %v445 = vunpack.c.h.bf16 %v313
        %v446 = vunpack.c.l.bf16 %v314
        %v447 = vunpack.c.h.bf16 %v314
        %v448 = vunpack.c.l.bf16 %v315
        %v449 = vunpack.c.h.bf16 %v315
        %v450 = vunpack.c.l.bf16 %v316
        %v451 = vunpack.c.h.bf16 %v316
        %v452 = vunpack.c.l.bf16 %v317
        %v453 = vunpack.c.h.bf16 %v317
        %v454 = vunpack.c.l.bf16 %v318
        %v455 = vunpack.c.h.bf16 %v318
        %v456 = vunpack.c.l.bf16 %v319
        %v457 = vunpack.c.h.bf16 %v319
        %v458 = vunpack.c.l.bf16 %v320
        %v459 = vunpack.c.h.bf16 %v320
        %v460 = vunpack.c.l.bf16 %v321
        %v461 = vunpack.c.h.bf16 %v321
        %v462 = vunpack.c.l.bf16 %v322
        %v463 = vunpack.c.h.bf16 %v322
        %v464 = vunpack.c.l.bf16 %v323
        %v465 = vunpack.c.h.bf16 %v323
        %v466 = vunpack.c.l.bf16 %v324
        %v467 = vunpack.c.h.bf16 %v324
        %v468 = vunpack.c.l.bf16 %v325
        %v469 = vunpack.c.h.bf16 %v325
        %v470 = vunpack.c.l.bf16 %v326
        %v471 = vunpack.c.h.bf16 %v326
        %v472 = vunpack.c.l.bf16 %v327
        %v473 = vunpack.c.h.bf16 %v327
        %v474 = vunpack.c.l.bf16 %v328
        %v475 = vunpack.c.h.bf16 %v328
        %v476 = vunpack.c.l.bf16 %v329
        %v477 = vunpack.c.h.bf16 %v329
        %v478 = vunpack.c.l.bf16 %v330
        %v479 = vunpack.c.h.bf16 %v330
        %v480 = vunpack.c.l.bf16 %v331
        %v481 = vunpack.c.h.bf16 %v331
        %v482 = vunpack.c.l.bf16 %v332
        %v483 = vunpack.c.h.bf16 %v332
        %v484 = vunpack.c.l.bf16 %v333
        %v485 = vunpack.c.h.bf16 %v333
        %v486 = vunpack.c.l.bf16 %v334
        %v487 = vunpack.c.h.bf16 %v334
        %v488 = vunpack.c.l.bf16 %v335
        %v489 = vunpack.c.h.bf16 %v335
        %v490 = vunpack.c.l.bf16 %v336
        %v491 = vunpack.c.h.bf16 %v336
        %v492 = vunpack.c.l.bf16 %v337
        %v493 = vunpack.c.h.bf16 %v337
        %v494 = vunpack.c.l.bf16 %v338
        %v495 = vunpack.c.h.bf16 %v338
        %v496 = vunpack.c.l.bf16 %v339
        %v497 = vunpack.c.h.bf16 %v339
        %v498 = vunpack.c.l.bf16 %v340
        %v499 = vunpack.c.h.bf16 %v340
        %v500 = vunpack.c.l.bf16 %v341
        %v501 = vunpack.c.h.bf16 %v341
        %v502 = vunpack.c.l.bf16 %v342
        %v503 = vunpack.c.h.bf16 %v342
        %v504 = vunpack.c.l.bf16 %v343
        %v505 = vunpack.c.h.bf16 %v343
        %v506 = vunpack.c.l.bf16 %v344
        %v507 = vunpack.c.h.bf16 %v344
        %v508 = vunpack.c.l.bf16 %v345
        %v509 = vunpack.c.h.bf16 %v345
        %v510 = vunpack.c.l.bf16 %v346
        %v511 = vunpack.c.h.bf16 %v346
        %v512 = vunpack.c.l.bf16 %v347
        %v513 = vunpack.c.h.bf16 %v347
        %v514 = vunpack.c.l.bf16 %v348
        %v515 = vunpack.c.h.bf16 %v348
        %v516 = vunpack.c.l.bf16 %v349
        %v517 = vunpack.c.h.bf16 %v349
        %v518 = vunpack.c.l.bf16 %v350
        %v519 = vunpack.c.h.bf16 %v350
        %v520 = vunpack.c.l.bf16 %v351
        %v521 = vunpack.c.h.bf16 %v351
        %v522 = vunpack.c.l.bf16 %v352
        %v523 = vunpack.c.h.bf16 %v352
        %v524 = vunpack.c.l.bf16 %v353
        %v525 = vunpack.c.h.bf16 %v353
        %v526 = vunpack.c.l.bf16 %v354
        %v527 = vunpack.c.h.bf16 %v354
        %v528 = vunpack.c.l.bf16 %v355
        %v529 = vunpack.c.h.bf16 %v355
        %v530 = vunpack.c.l.bf16 %v356
        %v531 = vunpack.c.h.bf16 %v356
        %v532 = vunpack.c.l.bf16 %v357
        %v533 = vunpack.c.h.bf16 %v357
        %v534 = vunpack.c.l.bf16 %v358
        %v535 = vunpack.c.h.bf16 %v358
        %v536 = vunpack.c.l.bf16 %v359
        %v537 = vunpack.c.h.bf16 %v359
        %v538 = vunpack.c.l.bf16 %v360
        %v539 = vunpack.c.h.bf16 %v360
        %v540 = vunpack.c.l.bf16 %v361
        %v541 = vunpack.c.h.bf16 %v361
        %v542 = vunpack.c.l.bf16 %v362
        %v543 = vunpack.c.h.bf16 %v362
        %v544 = vunpack.c.l.bf16 %v363
        %v545 = vunpack.c.h.bf16 %v363
        %v546 = vunpack.c.l.bf16 %v364
        %v547 = vunpack.c.h.bf16 %v364
        %v548 = vunpack.c.l.bf16 %v365
        %v549 = vunpack.c.h.bf16 %v365
        %v550 = vunpack.c.l.bf16 %v366
        %v551 = vunpack.c.h.bf16 %v366
        %v552 = vunpack.c.l.bf16 %v367
        %v553 = vunpack.c.h.bf16 %v367
        %v554 = vunpack.c.l.bf16 %v368
        %v555 = vunpack.c.h.bf16 %v368
        %v556 = vunpack.c.l.bf16 %v369
        %v557 = vunpack.c.h.bf16 %v369
        %v558 = vunpack.c.l.bf16 %v370
        %v559 = vunpack.c.h.bf16 %v370
        %v560 = vunpack.c.l.bf16 %v371
        %v561 = vunpack.c.h.bf16 %v371
        %v562 = vunpack.c.l.bf16 %v372
        %v563 = vunpack.c.h.bf16 %v372
        %v564 = vunpack.c.l.bf16 %v373
        %v565 = vunpack.c.h.bf16 %v373
        %v566 = vunpack.c.l.bf16 %v374
        %v567 = vunpack.c.h.bf16 %v374
        %v568 = vunpack.c.l.bf16 %v375
        %v569 = vunpack.c.h.bf16 %v375
        %v570 = vunpack.c.l.bf16 %v376
        %v571 = vunpack.c.h.bf16 %v376
        %v572 = vunpack.c.l.bf16 %v377
        %v573 = vunpack.c.h.bf16 %v377
        %v574 = vunpack.c.l.bf16 %v378
        %v575 = vunpack.c.h.bf16 %v378
        %v576 = vunpack.c.l.bf16 %v379
        %v577 = vunpack.c.h.bf16 %v379
        %v578 = vunpack.c.l.bf16 %v380
        %v579 = vunpack.c.h.bf16 %v380
        %v580 = vunpack.c.l.bf16 %v381
        %v581 = vunpack.c.h.bf16 %v381
        %v582 = vunpack.c.l.bf16 %v382
        %v583 = vunpack.c.h.bf16 %v382
        %v584 = vunpack.c.l.bf16 %v383
        %v585 = vunpack.c.h.bf16 %v383
        %v586 = vunpack.c.l.bf16 %v384
        %v587 = vunpack.c.h.bf16 %v384
        %v588 = vunpack.c.l.bf16 %v385
        %v589 = vunpack.c.h.bf16 %v385
        %v590 = vunpack.c.l.bf16 %v386
        %v591 = vunpack.c.h.bf16 %v386
        %v592 = vunpack.c.l.bf16 %v387
        %v593 = vunpack.c.h.bf16 %v387
        %v594 = vunpack.c.l.bf16 %v388
        %v595 = vunpack.c.h.bf16 %v388
        %v596 = vunpack.c.l.bf16 %v389
        %v597 = vunpack.c.h.bf16 %v389
        %v598 = vunpack.c.l.bf16 %v390
        %v599 = vunpack.c.h.bf16 %v390
        %v600 = vunpack.c.l.bf16 %v391
        %v601 = vunpack.c.h.bf16 %v391
        %v602 = vunpack.c.l.bf16 %v392
        %v603 = vunpack.c.h.bf16 %v392
        %v604 = vunpack.c.l.bf16 %v393
        %v605 = vunpack.c.h.bf16 %v393
        %v606 = vunpack.c.l.bf16 %v394
        %v607 = vunpack.c.h.bf16 %v394
        %v608 = vunpack.c.l.bf16 %v395
        %v609 = vunpack.c.h.bf16 %v395
        %v610 = vunpack.c.l.bf16 %v396
        %v611 = vunpack.c.h.bf16 %v396
        %v612 = vunpack.c.l.bf16 %v397
        %v613 = vunpack.c.h.bf16 %v397
        %v614 = vunpack.c.l.bf16 %v398
        %v615 = vunpack.c.h.bf16 %v398
        %v616 = vunpack.c.l.bf16 %v399
        %v617 = vunpack.c.h.bf16 %v399
        %v618 = vunpack.c.l.bf16 %v400
        %v619 = vunpack.c.h.bf16 %v400
        %v620 = vunpack.c.l.bf16 %v401
        %v621 = vunpack.c.h.bf16 %v401
        %v622 = vunpack.c.l.bf16 %v402
        %v623 = vunpack.c.h.bf16 %v402
        %v624 = vunpack.c.l.bf16 %v403
        %v625 = vunpack.c.h.bf16 %v403
        %v626 = vunpack.c.l.bf16 %v404
        %v627 = vunpack.c.h.bf16 %v404
        %v628 = vunpack.c.l.bf16 %v405
        %v629 = vunpack.c.h.bf16 %v405
        %v630 = vunpack.c.l.bf16 %v406
        %v631 = vunpack.c.h.bf16 %v406
        %v632 = vunpack.c.l.bf16 %v407
        %v633 = vunpack.c.h.bf16 %v407
        %v634 = vunpack.c.l.bf16 %v408
        %v635 = vunpack.c.h.bf16 %v408
        %v636 = vunpack.c.l.bf16 %v409
        %v637 = vunpack.c.h.bf16 %v409
        %v638 = vunpack.c.l.bf16 %v410
        %v639 = vunpack.c.h.bf16 %v410
        %v640 = vunpack.c.l.bf16 %v411
        %v641 = vunpack.c.h.bf16 %v411
        %v642 = vunpack.c.l.bf16 %v412
        %v643 = vunpack.c.h.bf16 %v412
        %v644 = vunpack.c.l.bf16 %v413
        %v645 = vunpack.c.h.bf16 %v413
        %v646 = vunpack.c.l.bf16 %v414
        %v647 = vunpack.c.h.bf16 %v414
        %v648 = vunpack.c.l.bf16 %v415
        %v649 = vunpack.c.h.bf16 %v415
        %v650 = vunpack.c.l.bf16 %v416
        %v651 = vunpack.c.h.bf16 %v416
        %v652 = vunpack.c.l.bf16 %v417
        %v653 = vunpack.c.h.bf16 %v417
        %v654 = vunpack.c.l.bf16 %v418
        %v655 = vunpack.c.h.bf16 %v418
        %v656 = vunpack.c.l.bf16 %v419
        %v657 = vunpack.c.h.bf16 %v419
        %v658 = vunpack.c.l.bf16 %v420
        %v659 = vunpack.c.h.bf16 %v420
        %v660 = vunpack.c.l.bf16 %v421
        %v661 = vunpack.c.h.bf16 %v421
        %v662 = vunpack.c.l.bf16 %v422
        %v663 = vunpack.c.h.bf16 %v422
        %v664 = vunpack.c.l.bf16 %v423
        %v665 = vunpack.c.h.bf16 %v423
        %v666 = vunpack.c.l.bf16 %v424
        %v667 = vunpack.c.h.bf16 %v424
        %v668 = vunpack.c.l.bf16 %v425
        %v669 = vunpack.c.h.bf16 %v425
        %v670 = vunpack.c.l.bf16 %v426
        %v671 = vunpack.c.h.bf16 %v426
        %v672 = vunpack.c.l.bf16 %v427
        %v673 = vunpack.c.h.bf16 %v427
        %v674 = vunpack.c.l.bf16 %v428
        %v675 = vunpack.c.h.bf16 %v428
        %v676 = vunpack.c.l.bf16 %v429
        %v677 = vunpack.c.h.bf16 %v429
        %v678 = vunpack.c.l.bf16 %v430
        %v679 = vunpack.c.h.bf16 %v430
        %v680 = vunpack.c.l.bf16 %v431
        %v681 = vunpack.c.h.bf16 %v431
        %v682 = vunpack.c.l.bf16 %v432
        %v683 = vunpack.c.h.bf16 %v432
        %v684 = vunpack.c.l.bf16 %v433
        %v685 = vunpack.c.h.bf16 %v433
        %v686 = vunpack.c.l.bf16 %v434
        %v687 = vunpack.c.h.bf16 %v434
        %v688 = vunpack.c.l.bf16 %v435
        %v689 = vunpack.c.h.bf16 %v435
        %v690 = vunpack.c.l.bf16 %v436
        %v691 = vunpack.c.h.bf16 %v436
        %v692 = vunpack.c.l.bf16 %v437
        %v693 = vunpack.c.h.bf16 %v437
        %694 = vmatpush.msra.mxu0 %v558
        %695 = vmatpush.msra.mxu0 %v550
        %696 = vmatpush.msra.mxu0 %v542
        %697 = vmatpush.msra.mxu0 %v534
        %698 = vmatpush.msra.mxu0 %v526
        %699 = vmatpush.msra.mxu0 %v518
        %700 = vmatpush.msra.mxu0 %v510
        %701 = vmatpush.msra.mxu0 %v502
        %702 = vmatpush.msra.mxu0 %v494
        %703 = vmatpush.msra.mxu0 %v486
        %704 = vmatpush.msra.mxu0 %v478
        %705 = vmatpush.msra.mxu0 %v470
        %706 = vmatpush.msra.mxu0 %v462
        %707 = vmatpush.msra.mxu0 %v454
        %708 = vmatpush.msra.mxu0 %v446
        %709 = vmatpush.msra.mxu0 %v438
        %710 = vmatmul.f32.gmra.mxu0 %v308
        %v711 = vpop.f32.mrf.mxu0
        %v712 = vadd.f32 0.0, %v711
        %713 = vdwg.mxu0
        %714 = vmatpush.msra.mxu0 %v686
        %715 = vmatpush.msra.mxu0 %v678
        %716 = vmatpush.msra.mxu0 %v670
        %717 = vmatpush.msra.mxu0 %v662
        %718 = vmatpush.msra.mxu0 %v654
        %719 = vmatpush.msra.mxu0 %v646
        %720 = vmatpush.msra.mxu0 %v638
        %721 = vmatpush.msra.mxu0 %v630
        %722 = vmatpush.msra.mxu0 %v622
        %723 = vmatpush.msra.mxu0 %v614
        %724 = vmatpush.msra.mxu0 %v606
        %725 = vmatpush.msra.mxu0 %v598
        %726 = vmatpush.msra.mxu0 %v590
        %727 = vmatpush.msra.mxu0 %v582
        %728 = vmatpush.msra.mxu0 %v574
        %729 = vmatpush.msra.mxu0 %v566
        %730 = vmatmul.f32.gmra.mxu0 %v309
        %v731 = vpop.f32.mrf.mxu0
        %v732 = vadd.f32 %v712, %v731
        %733 = vdwg.mxu0
        %734 = vmatpush.msra.mxu0 %v559
        %735 = vmatpush.msra.mxu0 %v551
        %736 = vmatpush.msra.mxu0 %v543
        %737 = vmatpush.msra.mxu0 %v535
        %738 = vmatpush.msra.mxu0 %v527
        %739 = vmatpush.msra.mxu0 %v519
        %740 = vmatpush.msra.mxu0 %v511
        %741 = vmatpush.msra.mxu0 %v503
        %742 = vmatpush.msra.mxu0 %v495
        %743 = vmatpush.msra.mxu0 %v487
        %744 = vmatpush.msra.mxu0 %v479
        %745 = vmatpush.msra.mxu0 %v471
        %746 = vmatpush.msra.mxu0 %v463
        %747 = vmatpush.msra.mxu0 %v455
        %748 = vmatpush.msra.mxu0 %v447
        %749 = vmatpush.msra.mxu0 %v439
        %750 = vmatmul.f32.gmra.mxu0 %v308
        %v751 = vpop.f32.mrf.mxu0
        %v752 = vadd.f32 0.0, %v751
        %753 = vdwg.mxu0
        %754 = vmatpush.msra.mxu0 %v687
        %755 = vmatpush.msra.mxu0 %v679
        %756 = vmatpush.msra.mxu0 %v671
        %757 = vmatpush.msra.mxu0 %v663
        %758 = vmatpush.msra.mxu0 %v655
        %759 = vmatpush.msra.mxu0 %v647
        %760 = vmatpush.msra.mxu0 %v639
        %761 = vmatpush.msra.mxu0 %v631
        %762 = vmatpush.msra.mxu0 %v623
        %763 = vmatpush.msra.mxu0 %v615
        %764 = vmatpush.msra.mxu0 %v607
        %765 = vmatpush.msra.mxu0 %v599
        %766 = vmatpush.msra.mxu0 %v591
        %767 = vmatpush.msra.mxu0 %v583
        %768 = vmatpush.msra.mxu0 %v575
        %769 = vmatpush.msra.mxu0 %v567
        %770 = vmatmul.f32.gmra.mxu0 %v309
        %v771 = vpop.f32.mrf.mxu0
        %v772 = vadd.f32 %v752, %v771
        %773 = vdwg.mxu0
        %774 = vmatpush.msra.mxu0 %v560
        %775 = vmatpush.msra.mxu0 %v552
        %776 = vmatpush.msra.mxu0 %v544
        %777 = vmatpush.msra.mxu0 %v536
        %778 = vmatpush.msra.mxu0 %v528
        %779 = vmatpush.msra.mxu0 %v520
        %780 = vmatpush.msra.mxu0 %v512
        %781 = vmatpush.msra.mxu0 %v504
        %782 = vmatpush.msra.mxu0 %v496
        %783 = vmatpush.msra.mxu0 %v488
        %784 = vmatpush.msra.mxu0 %v480
        %785 = vmatpush.msra.mxu0 %v472
        %786 = vmatpush.msra.mxu0 %v464
        %787 = vmatpush.msra.mxu0 %v456
        %788 = vmatpush.msra.mxu0 %v448
        %789 = vmatpush.msra.mxu0 %v440
        %790 = vmatmul.f32.gmra.mxu0 %v308
        %v791 = vpop.f32.mrf.mxu0
        %v792 = vadd.f32 0.0, %v791
        %793 = vdwg.mxu0
        %794 = vmatpush.msra.mxu0 %v688
        %795 = vmatpush.msra.mxu0 %v680
        %796 = vmatpush.msra.mxu0 %v672
        %797 = vmatpush.msra.mxu0 %v664
        %798 = vmatpush.msra.mxu0 %v656
        %799 = vmatpush.msra.mxu0 %v648
        %800 = vmatpush.msra.mxu0 %v640
        %801 = vmatpush.msra.mxu0 %v632
        %802 = vmatpush.msra.mxu0 %v624
        %803 = vmatpush.msra.mxu0 %v616
        %804 = vmatpush.msra.mxu0 %v608
        %805 = vmatpush.msra.mxu0 %v600
        %806 = vmatpush.msra.mxu0 %v592
        %807 = vmatpush.msra.mxu0 %v584
        %808 = vmatpush.msra.mxu0 %v576
        %809 = vmatpush.msra.mxu0 %v568
        %810 = vmatmul.f32.gmra.mxu0 %v309
        %v811 = vpop.f32.mrf.mxu0
        %v812 = vadd.f32 %v792, %v811
        %813 = vdwg.mxu0
        %814 = vmatpush.msra.mxu0 %v561
        %815 = vmatpush.msra.mxu0 %v553
        %816 = vmatpush.msra.mxu0 %v545
        %817 = vmatpush.msra.mxu0 %v537
        %818 = vmatpush.msra.mxu0 %v529
        %819 = vmatpush.msra.mxu0 %v521
        %820 = vmatpush.msra.mxu0 %v513
        %821 = vmatpush.msra.mxu0 %v505
        %822 = vmatpush.msra.mxu0 %v497
        %823 = vmatpush.msra.mxu0 %v489
        %824 = vmatpush.msra.mxu0 %v481
        %825 = vmatpush.msra.mxu0 %v473
        %826 = vmatpush.msra.mxu0 %v465
        %827 = vmatpush.msra.mxu0 %v457
        %828 = vmatpush.msra.mxu0 %v449
        %829 = vmatpush.msra.mxu0 %v441
        %830 = vmatmul.f32.gmra.mxu0 %v308
        %v831 = vpop.f32.mrf.mxu0
        %v832 = vadd.f32 0.0, %v831
        %833 = vdwg.mxu0
        %834 = vmatpush.msra.mxu0 %v689
        %835 = vmatpush.msra.mxu0 %v681
        %836 = vmatpush.msra.mxu0 %v673
        %837 = vmatpush.msra.mxu0 %v665
        %838 = vmatpush.msra.mxu0 %v657
        %839 = vmatpush.msra.mxu0 %v649
        %840 = vmatpush.msra.mxu0 %v641
        %841 = vmatpush.msra.mxu0 %v633
        %842 = vmatpush.msra.mxu0 %v625
        %843 = vmatpush.msra.mxu0 %v617
        %844 = vmatpush.msra.mxu0 %v609
        %845 = vmatpush.msra.mxu0 %v601
        %846 = vmatpush.msra.mxu0 %v593
        %847 = vmatpush.msra.mxu0 %v585
        %848 = vmatpush.msra.mxu0 %v577
        %849 = vmatpush.msra.mxu0 %v569
        %850 = vmatmul.f32.gmra.mxu0 %v309
        %v851 = vpop.f32.mrf.mxu0
        %v852 = vadd.f32 %v832, %v851
        %853 = vdwg.mxu0
        %854 = vmatpush.msra.mxu0 %v562
        %855 = vmatpush.msra.mxu0 %v554
        %856 = vmatpush.msra.mxu0 %v546
        %857 = vmatpush.msra.mxu0 %v538
        %858 = vmatpush.msra.mxu0 %v530
        %859 = vmatpush.msra.mxu0 %v522
        %860 = vmatpush.msra.mxu0 %v514
        %861 = vmatpush.msra.mxu0 %v506
        %862 = vmatpush.msra.mxu0 %v498
        %863 = vmatpush.msra.mxu0 %v490
        %864 = vmatpush.msra.mxu0 %v482
        %865 = vmatpush.msra.mxu0 %v474
        %866 = vmatpush.msra.mxu0 %v466
        %867 = vmatpush.msra.mxu0 %v458
        %868 = vmatpush.msra.mxu0 %v450
        %869 = vmatpush.msra.mxu0 %v442
        %870 = vmatmul.f32.gmra.mxu0 %v308
        %v871 = vpop.f32.mrf.mxu0
        %v872 = vadd.f32 0.0, %v871
        %873 = vdwg.mxu0
        %874 = vmatpush.msra.mxu0 %v690
        %875 = vmatpush.msra.mxu0 %v682
        %876 = vmatpush.msra.mxu0 %v674
        %877 = vmatpush.msra.mxu0 %v666
        %878 = vmatpush.msra.mxu0 %v658
        %879 = vmatpush.msra.mxu0 %v650
        %880 = vmatpush.msra.mxu0 %v642
        %881 = vmatpush.msra.mxu0 %v634
        %882 = vmatpush.msra.mxu0 %v626
        %883 = vmatpush.msra.mxu0 %v618
        %884 = vmatpush.msra.mxu0 %v610
        %885 = vmatpush.msra.mxu0 %v602
        %886 = vmatpush.msra.mxu0 %v594
        %887 = vmatpush.msra.mxu0 %v586
        %888 = vmatpush.msra.mxu0 %v578
        %889 = vmatpush.msra.mxu0 %v570
        %890 = vmatmul.f32.gmra.mxu0 %v309
        %v891 = vpop.f32.mrf.mxu0
        %v892 = vadd.f32 %v872, %v891
        %893 = vdwg.mxu0
        %894 = vmatpush.msra.mxu0 %v563
        %895 = vmatpush.msra.mxu0 %v555
        %896 = vmatpush.msra.mxu0 %v547
        %897 = vmatpush.msra.mxu0 %v539
        %898 = vmatpush.msra.mxu0 %v531
        %899 = vmatpush.msra.mxu0 %v523
        %900 = vmatpush.msra.mxu0 %v515
        %901 = vmatpush.msra.mxu0 %v507
        %902 = vmatpush.msra.mxu0 %v499
        %903 = vmatpush.msra.mxu0 %v491
        %904 = vmatpush.msra.mxu0 %v483
        %905 = vmatpush.msra.mxu0 %v475
        %906 = vmatpush.msra.mxu0 %v467
        %907 = vmatpush.msra.mxu0 %v459
        %908 = vmatpush.msra.mxu0 %v451
        %909 = vmatpush.msra.mxu0 %v443
        %910 = vmatmul.f32.gmra.mxu0 %v308
        %v911 = vpop.f32.mrf.mxu0
        %v912 = vadd.f32 0.0, %v911
        %913 = vdwg.mxu0
        %914 = vmatpush.msra.mxu0 %v691
        %915 = vmatpush.msra.mxu0 %v683
        %916 = vmatpush.msra.mxu0 %v675
        %917 = vmatpush.msra.mxu0 %v667
        %918 = vmatpush.msra.mxu0 %v659
        %919 = vmatpush.msra.mxu0 %v651
        %920 = vmatpush.msra.mxu0 %v643
        %921 = vmatpush.msra.mxu0 %v635
        %922 = vmatpush.msra.mxu0 %v627
        %923 = vmatpush.msra.mxu0 %v619
        %924 = vmatpush.msra.mxu0 %v611
        %925 = vmatpush.msra.mxu0 %v603
        %926 = vmatpush.msra.mxu0 %v595
        %927 = vmatpush.msra.mxu0 %v587
        %928 = vmatpush.msra.mxu0 %v579
        %929 = vmatpush.msra.mxu0 %v571
        %930 = vmatmul.f32.gmra.mxu0 %v309
        %v931 = vpop.f32.mrf.mxu0
        %v932 = vadd.f32 %v912, %v931
        %933 = vdwg.mxu0
        %934 = vmatpush.msra.mxu0 %v564
        %935 = vmatpush.msra.mxu0 %v556
        %936 = vmatpush.msra.mxu0 %v548
        %937 = vmatpush.msra.mxu0 %v540
        %938 = vmatpush.msra.mxu0 %v532
        %939 = vmatpush.msra.mxu0 %v524
        %940 = vmatpush.msra.mxu0 %v516
        %941 = vmatpush.msra.mxu0 %v508
        %942 = vmatpush.msra.mxu0 %v500
        %943 = vmatpush.msra.mxu0 %v492
        %944 = vmatpush.msra.mxu0 %v484
        %945 = vmatpush.msra.mxu0 %v476
        %946 = vmatpush.msra.mxu0 %v468
        %947 = vmatpush.msra.mxu0 %v460
        %948 = vmatpush.msra.mxu0 %v452
        %949 = vmatpush.msra.mxu0 %v444
        %950 = vmatmul.f32.gmra.mxu0 %v308
        %v951 = vpop.f32.mrf.mxu0
        %v952 = vadd.f32 0.0, %v951
        %953 = vdwg.mxu0
        %954 = vmatpush.msra.mxu0 %v692
        %955 = vmatpush.msra.mxu0 %v684
        %956 = vmatpush.msra.mxu0 %v676
        %957 = vmatpush.msra.mxu0 %v668
        %958 = vmatpush.msra.mxu0 %v660
        %959 = vmatpush.msra.mxu0 %v652
        %960 = vmatpush.msra.mxu0 %v644
        %961 = vmatpush.msra.mxu0 %v636
        %962 = vmatpush.msra.mxu0 %v628
        %963 = vmatpush.msra.mxu0 %v620
        %964 = vmatpush.msra.mxu0 %v612
        %965 = vmatpush.msra.mxu0 %v604
        %966 = vmatpush.msra.mxu0 %v596
        %967 = vmatpush.msra.mxu0 %v588
        %968 = vmatpush.msra.mxu0 %v580
        %969 = vmatpush.msra.mxu0 %v572
        %970 = vmatmul.f32.gmra.mxu0 %v309
        %v971 = vpop.f32.mrf.mxu0
        %v972 = vadd.f32 %v952, %v971
        %973 = vdwg.mxu0
        %974 = vmatpush.msra.mxu0 %v565
        %975 = vmatpush.msra.mxu0 %v557
        %976 = vmatpush.msra.mxu0 %v549
        %977 = vmatpush.msra.mxu0 %v541
        %978 = vmatpush.msra.mxu0 %v533
        %979 = vmatpush.msra.mxu0 %v525
        %980 = vmatpush.msra.mxu0 %v517
        %981 = vmatpush.msra.mxu0 %v509
        %982 = vmatpush.msra.mxu0 %v501
        %983 = vmatpush.msra.mxu0 %v493
        %984 = vmatpush.msra.mxu0 %v485
        %985 = vmatpush.msra.mxu0 %v477
        %986 = vmatpush.msra.mxu0 %v469
        %987 = vmatpush.msra.mxu0 %v461
        %988 = vmatpush.msra.mxu0 %v453
        %989 = vmatpush.msra.mxu0 %v445
        %990 = vmatmul.f32.gmra.mxu0 %v308
        %v991 = vpop.f32.mrf.mxu0
        %v992 = vadd.f32 0.0, %v991
        %993 = vdwg.mxu0
        %994 = vmatpush.msra.mxu0 %v693
        %995 = vmatpush.msra.mxu0 %v685
        %996 = vmatpush.msra.mxu0 %v677
        %997 = vmatpush.msra.mxu0 %v669
        %998 = vmatpush.msra.mxu0 %v661
        %999 = vmatpush.msra.mxu0 %v653
        %1000 = vmatpush.msra.mxu0 %v645
        %1001 = vmatpush.msra.mxu0 %v637
        %1002 = vmatpush.msra.mxu0 %v629
        %1003 = vmatpush.msra.mxu0 %v621
        %1004 = vmatpush.msra.mxu0 %v613
        %1005 = vmatpush.msra.mxu0 %v605
        %1006 = vmatpush.msra.mxu0 %v597
        %1007 = vmatpush.msra.mxu0 %v589
        %1008 = vmatpush.msra.mxu0 %v581
        %1009 = vmatpush.msra.mxu0 %v573
        %1010 = vmatmul.f32.gmra.mxu0 %v309
        %v1011 = vpop.f32.mrf.mxu0
        %v1012 = vadd.f32 %v992, %v1011
        %1013 = vdwg.mxu0
        %v1022 = vrot.slane %v772, 6
        %v1023 = vrot.slane %v812, 4
        %v1024 = vrot.slane %v852, 2
        %v1025 = vrot.slane %v932, 6
        %v1026 = vrot.slane %v972, 4
        %v1027 = vrot.slane %v1012, 2
        %v1028 = vsel %vm275, %v732, %v1022
        %vm1029 = vcmask 1045508
        %v1030 = vsel %vm1029, %v1023, %v1024
        %vm1031 = vcmask 1043456
        %v1032 = vsel %vm1031, %v1028, %v1030
        %v1033 = vsel %vm275, %v892, %v1025
        %v1034 = vsel %vm1029, %v1026, %v1027
        %v1035 = vsel %vm1031, %v1033, %v1034
        %1038 = vst [vmem:[%s252] sm:$0xff] %v1032
        %1039 = vst [vmem:[%s252 + $0x8] sm:$0xff] %v1035
        %s1040 = smul.u32 8, %s21
        %p1041 = scmp.lt.s32.totalorder %s20, 1
        %s1042 = scalar_select %p1041, %s20, 1
        %p1043 = scmp.lt.s32.totalorder %s1040, 7
        %s1044 = scalar_select %p1043, %s1040, 7
        %s1045 = smul.addr %s1042, 8
        %s1046 = sadd.s32 %s1044, %s1045
        %s1047 = smul.addr %s1046, 2
        %s1048 = scalar_lea.vmem %s4, %s1047
        // Predicated region
        $region41: #{transition_forward.1} parent=35 // pred_check
          %p1049 = pneg %p139
        $region42: #{transition_forward.1} parent=35 // pred_check_branch
          %1051 = sbr.rel (%p1049) target = $region44
        $region43: #{transition_forward.1} parent=35 // pred_region
          %s1052 = smul.u32 8, %s21
        $region44: #{transition_forward.1} parent=35 // pred_fallthru
          _
      $region36: #{transition_forward.1} parent=5 // pred_fallthru
        _
      %p1053 = scmp.le.s32.totalorder 2, %s11
      // Predicated region
      $region45: #{transition_forward.1} parent=5 // pred_check
        %p1054 = pneg %p1053
      $region46: #{transition_forward.1} parent=5 // pred_check_branch
        %1056 = sbr.rel (%p1054) target = $region48
      $region47: #{transition_forward.1} parent=5 // pred_region
        %s1057 = ssub.s32 %s11, 2
        // Predicated region
        $region49: #{transition_forward.1} parent=47 // pred_check
          %p1058 = pneg %p145
        $region50: #{transition_forward.1} parent=47 // pred_check_branch
          %1060 = sbr.rel (%p1058) target = $region52
        $region51: #{transition_forward.1} parent=47 // pred_region
          %s1061 = smul.u32 8, %s23
          %p1062 = scmp.lt.s32.totalorder %s22, 1
          %s1063 = scalar_select %p1062, %s22, 1
          %p1064 = scmp.lt.s32.totalorder %s1061, 7
          %s1065 = scalar_select %p1064, %s1061, 7
          %s1066 = smul.addr %s1063, 8
          %s1067 = sadd.s32 %s1065, %s1066
          %s1068 = smul.addr %s1067, 2
          %s1069 = scalar_lea.vmem %s4, %s1068
        $region52: #{transition_forward.1} parent=47 // pred_fallthru
          _
      $region48: #{transition_forward.1} parent=5 // pred_fallthru
        _
    $region6: #{transition_forward.1} parent=1 // loop_footer
      %s15 = sadd.s32 1, %s11
    $region7: #{transition_forward.1} parent=1 // loop_footer_branch
      %10 = sbr.rel target = $region3
    $region8: #{transition_forward.1} parent=1 // loop_exit
      _
    %1070 = vsyncpa [#allocation3], 1
    %s1071 = scalar_lea.sflag [#allocation3], 1
    %1072 = vsyncpa %s1071, 1

</llo_original>
